<compile_context>
chip_gen: v7x
topology: tpu7x:2x2x1
jax: 0.10.0
libtpu: 0.0.40
codegen_flags: <defaults>
</compile_context>

<pallas_src>
import functools

import jax
import jax.numpy as jnp
from jax.experimental import pallas as pl
from jax.experimental.pallas import tpu as pltpu


def _round_up(x, m):
    return ((x + m - 1) // m) * m


def _pad2d(x, rows, cols):
    r, c = x.shape
    return jnp.pad(x, ((0, rows - r), (0, cols - c)))


def _gan_generator_kernel(
    x_ref, noise_ref, w1_ref, w2_ref, w3_ref, vec_ref, out_ref,
    *, temperature: float, eps: float, matmul_dtype,
):
    # Packed per-feature vectors (single lane-dense (8, HP) block):
    #   row 0 = gamma1, row 1 = beta1, row 2 = gamma2, row 3 = beta2,
    #   row 4 = b3 (zero-padded), rows 5..7 = padding.
    g1 = vec_ref[0:1, :]
    be1 = vec_ref[1:2, :]
    g2 = vec_ref[2:3, :]
    be2 = vec_ref[3:4, :]

    # add_noise: temperature * randn + latent  (elementwise, VPU)
    x = x_ref[...] + temperature * noise_ref[...]

    def bn_leaky(h, gamma, beta):
        # BatchNorm1d, training mode: biased batch statistics (two-pass form
        # kept for numerical safety).
        mean = jnp.mean(h, axis=0, keepdims=True)
        d = h - mean
        var = jnp.mean(d * d, axis=0, keepdims=True)
        # Fold scale/shift: (h-mean)*rsqrt(var+eps)*g + be  ==  h*a + c
        a = gamma * jax.lax.rsqrt(var + eps)      # rsqrt rides the EUP slot
        c = beta - mean * a
        h = h * a + c
        # LeakyReLU(0.2): slope < 1  =>  max(h, 0.2*h)
        return jnp.maximum(h, 0.2 * h)

    # NOTE: Linear biases b1/b2 intentionally omitted — exactly cancelled by
    # the batch-statistic BatchNorm that follows each of these Linear layers.
    h = jnp.dot(x.astype(matmul_dtype), w1_ref[...],
                preferred_element_type=jnp.float32)
    h = bn_leaky(h, g1, be1)

    h = jnp.dot(h.astype(matmul_dtype), w2_ref[...],
                preferred_element_type=jnp.float32)
    h = bn_leaky(h, g2, be2)

    z = jnp.dot(h.astype(matmul_dtype), w3_ref[...],
                preferred_element_type=jnp.float32)
    z = z + vec_ref[4:5, 0:out_ref.shape[1]]          # final bias b3
    out_ref[...] = z.astype(out_ref.dtype)


def gan_generator_forward(latent, noise, params, *, temperature=0.01, eps=1e-5,
                          matmul_dtype=jnp.float32):
    """GanGenerator latent mapper on TPU via a single Pallas kernel.

    latent : [B, L]     noise : [B, L]  (standard normal, scaled in-kernel)
    params : dict with w1[L,2L] b1[1,2L] g1[1,2L] be1[1,2L]
                       w2[2L,2L] b2 g2 be2 [1,2L]
                       w3[2L,L]  b3[1,L]
    Returns z_g : [B, L]

    matmul_dtype: set to jnp.bfloat16 on v6e/v7x at scale (f32 accumulation is
    always used via preferred_element_type); f32 here for tight verification.
    """
    B, L = latent.shape
    H = 2 * L
    LP = _round_up(L, 128)   # lane-dense feature widths
    HP = _round_up(H, 128)

    # Zero-pad feature dims wrapper-side (lane-dense loads/stores, full MXU
    # columns).  Padded BN columns have gamma = beta = 0 -> stay exactly zero.
    x_p = _pad2d(latent, B, LP)
    n_p = _pad2d(noise, B, LP)
    w1 = _pad2d(params["w1"], LP, HP).astype(matmul_dtype)
    w2 = _pad2d(params["w2"], HP, HP).astype(matmul_dtype)
    w3 = _pad2d(params["w3"], HP, LP).astype(matmul_dtype)

    # Pack all per-feature vectors into one (8, HP) f32 tile -> single DMA.
    vec = jnp.zeros((8, HP), jnp.float32)
    vec = vec.at[0, :H].set(params["g1"].reshape(-1))
    vec = vec.at[1, :H].set(params["be1"].reshape(-1))
    vec = vec.at[2, :H].set(params["g2"].reshape(-1))
    vec = vec.at[3, :H].set(params["be2"].reshape(-1))
    vec = vec.at[4, :L].set(params["b3"].reshape(-1))

    kernel = functools.partial(
        _gan_generator_kernel,
        temperature=float(temperature), eps=float(eps), matmul_dtype=matmul_dtype,
    )

    def full_spec(shape):
        # Block == full (padded) array: last two dims are (8,128)-aligned.
        return pl.BlockSpec(shape, lambda: tuple(0 for _ in shape))

    out = pl.pallas_call(
        kernel,
        out_shape=jax.ShapeDtypeStruct((B, LP), latent.dtype),
        in_specs=[
            full_spec((B, LP)),    # latent (padded)
            full_spec((B, LP)),    # noise  (padded)
            full_spec((LP, HP)),   # w1
            full_spec((HP, HP)),   # w2
            full_spec((HP, LP)),   # w3
            full_spec((8, HP)),    # packed per-feature vectors
        ],
        out_specs=full_spec((B, LP)),
        compiler_params=pltpu.CompilerParams(dimension_semantics=()),
    )(x_p, n_p, w1, w2, w3, vec)

    # Kernel stores a lane-dense (B, LP) slab; slice back to the logical width.
    return out[:, :L]


def init_params(key, latent_dim):
    """Deterministic synthetic parameter init (PyTorch-style uniform ranges)."""
    L, H = latent_dim, 2 * latent_dim
    ks = jax.random.split(key, 6)

    def lin(k, fan_in, fan_out):
        bound = 1.0 / jnp.sqrt(fan_in)
        kw, kb = jax.random.split(k)
        w = jax.random.uniform(kw, (fan_in, fan_out), jnp.float32, -bound, bound)
        b = jax.random.uniform(kb, (1, fan_out), jnp.float32, -bound, bound)
        return w, b

    w1, b1 = lin(ks[0], L, H)
    w2, b2 = lin(ks[1], H, H)
    w3, b3 = lin(ks[2], H, L)
    return {
        "w1": w1, "b1": b1,
        "g1": jnp.ones((1, H), jnp.float32), "be1": jnp.zeros((1, H), jnp.float32),
        "w2": w2, "b2": b2,
        "g2": jnp.ones((1, H), jnp.float32), "be2": jnp.zeros((1, H), jnp.float32),
        "w3": w3, "b3": b3,
    }


def reference_forward(latent, noise, params, temperature=0.01, eps=1e-5):
    """Pure-JAX reference faithful to the PyTorch module (biases included)."""
    x = latent + temperature * noise
    h = x @ params["w1"] + params["b1"]
    m, v = jnp.mean(h, 0, keepdims=True), jnp.var(h, 0, keepdims=True)
    h = (h - m) / jnp.sqrt(v + eps) * params["g1"] + params["be1"]
    h = jnp.where(h >= 0, h, 0.2 * h)
    h = h @ params["w2"] + params["b2"]
    m, v = jnp.mean(h, 0, keepdims=True), jnp.var(h, 0, keepdims=True)
    h = (h - m) / jnp.sqrt(v + eps) * params["g2"] + params["be2"]
    h = jnp.where(h >= 0, h, 0.2 * h)
    return h @ params["w3"] + params["b3"]


if __name__ == "__main__":
    # Small shapes: batch=8, latent_dim=32 (hidden = 64); padded to 128 lanes
    # inside the wrapper.
    B, LATENT_DIM = 8, 32
    TEMPERATURE = 0.01

    key = jax.random.PRNGKey(0)
    k_lat, k_noise, k_par = jax.random.split(key, 3)

    target_latent = jax.random.normal(k_lat, (B, LATENT_DIM), jnp.float32)
    # add_noise's randn is generated here deterministically and scaled in-kernel.
    noise = jax.random.normal(k_noise, (B, LATENT_DIM), jnp.float32)
    params = init_params(k_par, LATENT_DIM)

    # discriminator=None path: output_dict = {'z_g': z_g}
    z_g = gan_generator_forward(
        target_latent, noise, params, temperature=TEMPERATURE
    )
    z_g = jax.block_until_ready(z_g)

    ref = reference_forward(target_latent, noise, params, TEMPERATURE)
    assert z_g.shape == (B, LATENT_DIM)
    assert jnp.allclose(z_g, ref, atol=2e-4, rtol=2e-4)

    print("KERNEL_OK")
</pallas_src>

<mosaic_0001>
module attributes {stable_mosaic.version = 11 : i64} {
  func.func @_gan_generator_kernel(%arg0: memref<8x128xf32, #tpu.memory_space<vmem>>, %arg1: memref<8x128xf32, #tpu.memory_space<vmem>>, %arg2: memref<128x128xf32, #tpu.memory_space<vmem>>, %arg3: memref<128x128xf32, #tpu.memory_space<vmem>>, %arg4: memref<128x128xf32, #tpu.memory_space<vmem>>, %arg5: memref<8x128xf32, #tpu.memory_space<vmem>>, %arg6: memref<8x128xf32, #tpu.memory_space<vmem>>) attributes {dimension_semantics = [], scalar_prefetch = 0 : i64, scratch_operands = 0 : i64, tpu.core_type = #tpu.core_type<tc>} {
    %c0 = arith.constant 0 : index
    %c0_0 = arith.constant 0 : index
    %0 = vector.load %arg5[%c0, %c0_0] : memref<8x128xf32, #tpu.memory_space<vmem>>, vector<1x128xf32>
    %c1 = arith.constant 1 : index
    %c0_1 = arith.constant 0 : index
    %1 = vector.load %arg5[%c1, %c0_1] : memref<8x128xf32, #tpu.memory_space<vmem>>, vector<1x128xf32>
    %c2 = arith.constant 2 : index
    %c0_2 = arith.constant 0 : index
    %2 = vector.load %arg5[%c2, %c0_2] : memref<8x128xf32, #tpu.memory_space<vmem>>, vector<1x128xf32>
    %c3 = arith.constant 3 : index
    %c0_3 = arith.constant 0 : index
    %3 = vector.load %arg5[%c3, %c0_3] : memref<8x128xf32, #tpu.memory_space<vmem>>, vector<1x128xf32>
    %c0_4 = arith.constant 0 : index
    %c0_5 = arith.constant 0 : index
    %4 = vector.load %arg0[%c0_4, %c0_5] : memref<8x128xf32, #tpu.memory_space<vmem>>, vector<8x128xf32>
    %c0_6 = arith.constant 0 : index
    %c0_7 = arith.constant 0 : index
    %5 = vector.load %arg1[%c0_6, %c0_7] : memref<8x128xf32, #tpu.memory_space<vmem>>, vector<8x128xf32>
    %cst = arith.constant 0.00999999977 : f32
    %6 = vector.broadcast %cst : f32 to vector<8x128xf32>
    %7 = arith.mulf %6, %5 : vector<8x128xf32>
    %8 = arith.addf %4, %7 : vector<8x128xf32>
    %c0_8 = arith.constant 0 : index
    %c0_9 = arith.constant 0 : index
    %9 = vector.load %arg2[%c0_8, %c0_9] : memref<128x128xf32, #tpu.memory_space<vmem>>, vector<128x128xf32>
    %cst_10 = arith.constant dense<0.000000e+00> : vector<8x128xf32>
    %10 = tpu.matmul %8, %9, %cst_10 {dimension_numbers = #tpu.dot_dimension_numbers<[1], [0], [0], [1], [0, 0, 1, 1], [], []>} : vector<8x128xf32>, vector<128x128xf32>, vector<8x128xf32> -> vector<8x128xf32>
    %cst_11 = arith.constant dense<0.000000e+00> : vector<128xf32>
    %11 = vector.multi_reduction <add>, %10, %cst_11 [0] : vector<8x128xf32> to vector<128xf32>
    %12 = vector.shape_cast %11 : vector<128xf32> to vector<1x128xf32>
    %cst_12 = arith.constant 8.000000e+00 : f32
    %13 = vector.broadcast %cst_12 : f32 to vector<1x128xf32>
    %14 = arith.divf %12, %13 : vector<1x128xf32>
    %15 = vector.broadcast %14 : vector<1x128xf32> to vector<8x128xf32>
    %16 = arith.subf %10, %15 : vector<8x128xf32>
    %17 = arith.mulf %16, %16 : vector<8x128xf32>
    %cst_13 = arith.constant dense<0.000000e+00> : vector<128xf32>
    %18 = vector.multi_reduction <add>, %17, %cst_13 [0] : vector<8x128xf32> to vector<128xf32>
    %19 = vector.shape_cast %18 : vector<128xf32> to vector<1x128xf32>
    %cst_14 = arith.constant 8.000000e+00 : f32
    %20 = vector.broadcast %cst_14 : f32 to vector<1x128xf32>
    %21 = arith.divf %19, %20 : vector<1x128xf32>
    %cst_15 = arith.constant 9.99999974E-6 : f32
    %22 = vector.broadcast %cst_15 : f32 to vector<1x128xf32>
    %23 = arith.addf %21, %22 : vector<1x128xf32>
    %24 = math.rsqrt %23 : vector<1x128xf32>
    %25 = arith.mulf %0, %24 : vector<1x128xf32>
    %26 = arith.mulf %14, %25 : vector<1x128xf32>
    %27 = arith.subf %1, %26 : vector<1x128xf32>
    %28 = vector.broadcast %25 : vector<1x128xf32> to vector<8x128xf32>
    %29 = arith.mulf %10, %28 : vector<8x128xf32>
    %30 = vector.broadcast %27 : vector<1x128xf32> to vector<8x128xf32>
    %31 = arith.addf %29, %30 : vector<8x128xf32>
    %cst_16 = arith.constant 2.000000e-01 : f32
    %32 = vector.broadcast %cst_16 : f32 to vector<8x128xf32>
    %33 = arith.mulf %32, %31 : vector<8x128xf32>
    %34 = arith.maximumf %31, %33 : vector<8x128xf32>
    %c0_17 = arith.constant 0 : index
    %c0_18 = arith.constant 0 : index
    %35 = vector.load %arg3[%c0_17, %c0_18] : memref<128x128xf32, #tpu.memory_space<vmem>>, vector<128x128xf32>
    %cst_19 = arith.constant dense<0.000000e+00> : vector<8x128xf32>
    %36 = tpu.matmul %34, %35, %cst_19 {dimension_numbers = #tpu.dot_dimension_numbers<[1], [0], [0], [1], [0, 0, 1, 1], [], []>} : vector<8x128xf32>, vector<128x128xf32>, vector<8x128xf32> -> vector<8x128xf32>
    %cst_20 = arith.constant dense<0.000000e+00> : vector<128xf32>
    %37 = vector.multi_reduction <add>, %36, %cst_20 [0] : vector<8x128xf32> to vector<128xf32>
    %38 = vector.shape_cast %37 : vector<128xf32> to vector<1x128xf32>
    %cst_21 = arith.constant 8.000000e+00 : f32
    %39 = vector.broadcast %cst_21 : f32 to vector<1x128xf32>
    %40 = arith.divf %38, %39 : vector<1x128xf32>
    %41 = vector.broadcast %40 : vector<1x128xf32> to vector<8x128xf32>
    %42 = arith.subf %36, %41 : vector<8x128xf32>
    %43 = arith.mulf %42, %42 : vector<8x128xf32>
    %cst_22 = arith.constant dense<0.000000e+00> : vector<128xf32>
    %44 = vector.multi_reduction <add>, %43, %cst_22 [0] : vector<8x128xf32> to vector<128xf32>
    %45 = vector.shape_cast %44 : vector<128xf32> to vector<1x128xf32>
    %cst_23 = arith.constant 8.000000e+00 : f32
    %46 = vector.broadcast %cst_23 : f32 to vector<1x128xf32>
    %47 = arith.divf %45, %46 : vector<1x128xf32>
    %cst_24 = arith.constant 9.99999974E-6 : f32
    %48 = vector.broadcast %cst_24 : f32 to vector<1x128xf32>
    %49 = arith.addf %47, %48 : vector<1x128xf32>
    %50 = math.rsqrt %49 : vector<1x128xf32>
    %51 = arith.mulf %2, %50 : vector<1x128xf32>
    %52 = arith.mulf %40, %51 : vector<1x128xf32>
    %53 = arith.subf %3, %52 : vector<1x128xf32>
    %54 = vector.broadcast %51 : vector<1x128xf32> to vector<8x128xf32>
    %55 = arith.mulf %36, %54 : vector<8x128xf32>
    %56 = vector.broadcast %53 : vector<1x128xf32> to vector<8x128xf32>
    %57 = arith.addf %55, %56 : vector<8x128xf32>
    %cst_25 = arith.constant 2.000000e-01 : f32
    %58 = vector.broadcast %cst_25 : f32 to vector<8x128xf32>
    %59 = arith.mulf %58, %57 : vector<8x128xf32>
    %60 = arith.maximumf %57, %59 : vector<8x128xf32>
    %c0_26 = arith.constant 0 : index
    %c0_27 = arith.constant 0 : index
    %61 = vector.load %arg4[%c0_26, %c0_27] : memref<128x128xf32, #tpu.memory_space<vmem>>, vector<128x128xf32>
    %cst_28 = arith.constant dense<0.000000e+00> : vector<8x128xf32>
    %62 = tpu.matmul %60, %61, %cst_28 {dimension_numbers = #tpu.dot_dimension_numbers<[1], [0], [0], [1], [0, 0, 1, 1], [], []>} : vector<8x128xf32>, vector<128x128xf32>, vector<8x128xf32> -> vector<8x128xf32>
    %c4 = arith.constant 4 : index
    %c0_29 = arith.constant 0 : index
    %63 = vector.load %arg5[%c4, %c0_29] : memref<8x128xf32, #tpu.memory_space<vmem>>, vector<1x128xf32>
    %64 = vector.broadcast %63 : vector<1x128xf32> to vector<8x128xf32>
    %65 = arith.addf %62, %64 : vector<8x128xf32>
    %c0_30 = arith.constant 0 : index
    %c0_31 = arith.constant 0 : index
    %66 = vector.load %arg6[%c0_30, %c0_31] : memref<8x128xf32, #tpu.memory_space<vmem>>, vector<8x128xf32>
    tpu.vector_store %arg6[%c0_30, %c0_31], %65 {strides = array<i32>} : memref<8x128xf32, #tpu.memory_space<vmem>>, vector<8x128xf32>,
    return
  }
}

</mosaic_0001>

<llo_original>
// kernel: tpu_custom_call.1
$region0: #{tpu_custom_call.1}
  #allocation0 [shape = 'u32[]', space=smem, size = 0x4, offset = 0x4, fixed_abs, tag = 'smem constant byte address 0x4 - core index']
  #allocation1 [shape = 'u32[144,128]{1,0:T(1,128)}', space=vmem, size = 0x12000, scoped, tag = 'internal scratch']
  %s0 = inlined_call_operand.hbm [shape: f32[8,128], index: 0, kind: input, shape index: {}]
  %s1 = inlined_call_operand.hbm [shape: f32[8,128], index: 1, kind: input, shape index: {}]
  %s2 = inlined_call_operand.hbm [shape: f32[128,128], index: 2, kind: input, shape index: {}]
  %s3 = inlined_call_operand.hbm [shape: f32[128,128], index: 3, kind: input, shape index: {}]
  %s4 = inlined_call_operand.hbm [shape: f32[128,128], index: 4, kind: input, shape index: {}]
  %s5 = inlined_call_operand.vmem [shape: f32[8,128], index: 5, kind: input, shape index: {}]
  %s6 = inlined_call_operand.hbm [shape: f32[8,128], index: 6, kind: output, shape index: {}]
  %s7 = sld [smem:[#allocation0]]
  $region54: #{tpu_custom_call.1} parent=0
    _
  %s9 = ssub.s32 1, %s7
  %s10 = scalar_select 0, %s9, %s7
  $region1: #{tpu_custom_call.1} parent=0
    #allocation2 [shape = 'u8[4096]{0}', space=vmem, size = 0x1000, scoped, tag = 'input window, operand 0, single buffered']
    #allocation3 [shape = 's32[1]{0}', space=sflag, size = 0x4, scoped, tag = 'scoped memory for tpu_custom_call.1']
    #allocation4 [shape = 's32[1]{0}', space=sflag, size = 0x4, scoped, tag = 'scoped memory for tpu_custom_call.1']
    #allocation5 [shape = 'u8[4096]{0}', space=vmem, size = 0x1000, scoped, tag = 'input window, operand 1, single buffered']
    #allocation6 [shape = 's32[1]{0}', space=sflag, size = 0x4, scoped, tag = 'scoped memory for tpu_custom_call.1']
    #allocation7 [shape = 'u8[65536]{0}', space=vmem, size = 0x10000, scoped, tag = 'input window, operand 2, single buffered']
    #allocation8 [shape = 'u8[65536]{0}', space=vmem, size = 0x10000, scoped, tag = 'input window, operand 3, single buffered']
    #allocation9 [shape = 's32[1]{0}', space=sflag, size = 0x4, scoped, tag = 'scoped memory for tpu_custom_call.1']
    #allocation10 [shape = 'u8[65536]{0}', space=vmem, size = 0x10000, scoped, tag = 'input window, operand 4, single buffered']
    #allocation11 [shape = 'u8[4096]{0}', space=vmem, size = 0x1000, scoped, tag = 'output window, operand 0, single buffered']
    %11 = vsyncpa [#allocation3], 0
    %12 = vsyncpa [#allocation6], 0
    %13 = vsyncpa [#allocation9], 0
    %14 = vsyncpa [#allocation4], 0
    // Predicated region
    $region2: #{tpu_custom_call.1} parent=1 // pred_check
      _
    $region3: #{tpu_custom_call.1} parent=1 // pred_check_branch
      %16 = sbr.rel (0) target = $region5
    $region4: #{tpu_custom_call.1} parent=1 // pred_region
      %s18 = ssub.s32 128, 128
      %19 = vsyncadd [#allocation3], %s18
      %s21 = sshll.u32 [#allocation2], 4
      %s22 = int_to_ptr.vmem [resolvable:$true] %s21
      %24 = dma.hbm_to_vmem [thread:$0]  %s0, 128, %s22, [#allocation3]
    $region5: #{tpu_custom_call.1} parent=1 // pred_fallthru
      _
    // Predicated region
    $region6: #{tpu_custom_call.1} parent=1 // pred_check
      _
    $region7: #{tpu_custom_call.1} parent=1 // pred_check_branch
      %26 = sbr.rel (0) target = $region9
    $region8: #{tpu_custom_call.1} parent=1 // pred_region
      %s28 = ssub.s32 128, 128
      %29 = vsyncadd [#allocation6], %s28
      %s31 = sshll.u32 [#allocation5], 4
      %s32 = int_to_ptr.vmem [resolvable:$true] %s31
      %34 = dma.hbm_to_vmem [thread:$0]  %s1, 128, %s32, [#allocation6]
    $region9: #{tpu_custom_call.1} parent=1 // pred_fallthru
      _
    // Predicated region
    $region10: #{tpu_custom_call.1} parent=1 // pred_check
      _
    $region11: #{tpu_custom_call.1} parent=1 // pred_check_branch
      %36 = sbr.rel (0) target = $region13
    $region12: #{tpu_custom_call.1} parent=1 // pred_region
      %s38 = ssub.s32 2048, 2048
      %39 = vsyncadd [#allocation6], %s38
      %s40 = sshll.u32 [#allocation7], 4
      %s41 = int_to_ptr.vmem [resolvable:$true] %s40
      %46 = dma.hbm_to_vmem [thread:$0]  %s2, 2048, %s41, [#allocation6], 128, 128, 8
    $region13: #{tpu_custom_call.1} parent=1 // pred_fallthru
      _
    // Predicated region
    $region14: #{tpu_custom_call.1} parent=1 // pred_check
      _
    $region15: #{tpu_custom_call.1} parent=1 // pred_check_branch
      %48 = sbr.rel (0) target = $region17
    $region16: #{tpu_custom_call.1} parent=1 // pred_region
      %s50 = ssub.s32 2048, 2048
      %51 = vsyncadd [#allocation9], %s50
      %s52 = sshll.u32 [#allocation8], 4
      %s53 = int_to_ptr.vmem [resolvable:$true] %s52
      %58 = dma.hbm_to_vmem [thread:$0]  %s3, 2048, %s53, [#allocation9], 128, 128, 8
    $region17: #{tpu_custom_call.1} parent=1 // pred_fallthru
      _
    // Predicated region
    $region18: #{tpu_custom_call.1} parent=1 // pred_check
      _
    $region19: #{tpu_custom_call.1} parent=1 // pred_check_branch
      %60 = sbr.rel (0) target = $region21
    $region20: #{tpu_custom_call.1} parent=1 // pred_region
      %s62 = ssub.s32 2048, 2048
      %63 = vsyncadd [#allocation9], %s62
      %s64 = sshll.u32 [#allocation10], 4
      %s65 = int_to_ptr.vmem [resolvable:$true] %s64
      %70 = dma.hbm_to_vmem [thread:$0]  %s4, 2048, %s65, [#allocation9], 128, 128, 8
    $region21: #{tpu_custom_call.1} parent=1 // pred_fallthru
      _
    // Predicated region
    $region22: #{tpu_custom_call.1} parent=1 // pred_check
      _
    $region23: #{tpu_custom_call.1} parent=1 // pred_check_branch
      %72 = sbr.rel (0) target = $region25
    $region24: #{tpu_custom_call.1} parent=1 // pred_region
      _
    $region25: #{tpu_custom_call.1} parent=1 // pred_fallthru
      _
    // Predicated region
    $region26: #{tpu_custom_call.1} parent=1 // pred_check
      _
    $region27: #{tpu_custom_call.1} parent=1 // pred_check_branch
      %74 = sbr.rel (0) target = $region29
    $region28: #{tpu_custom_call.1} parent=1 // pred_region
      %75 = dma.done [#allocation3], 128
    $region29: #{tpu_custom_call.1} parent=1 // pred_fallthru
      _
    // Predicated region
    $region30: #{tpu_custom_call.1} parent=1 // pred_check
      _
    $region31: #{tpu_custom_call.1} parent=1 // pred_check_branch
      %77 = sbr.rel (0) target = $region33
    $region32: #{tpu_custom_call.1} parent=1 // pred_region
      %78 = dma.done [#allocation6], 128
    $region33: #{tpu_custom_call.1} parent=1 // pred_fallthru
      _
    // Predicated region
    $region34: #{tpu_custom_call.1} parent=1 // pred_check
      _
    $region35: #{tpu_custom_call.1} parent=1 // pred_check_branch
      %80 = sbr.rel (0) target = $region37
    $region36: #{tpu_custom_call.1} parent=1 // pred_region
      %81 = dma.done [#allocation6], 2048
    $region37: #{tpu_custom_call.1} parent=1 // pred_fallthru
      _
    // Predicated region
    $region38: #{tpu_custom_call.1} parent=1 // pred_check
      _
    $region39: #{tpu_custom_call.1} parent=1 // pred_check_branch
      %83 = sbr.rel (0) target = $region41
    $region40: #{tpu_custom_call.1} parent=1 // pred_region
      %84 = dma.done [#allocation9], 2048
    $region41: #{tpu_custom_call.1} parent=1 // pred_fallthru
      _
    // Predicated region
    $region42: #{tpu_custom_call.1} parent=1 // pred_check
      _
    $region43: #{tpu_custom_call.1} parent=1 // pred_check_branch
      %86 = sbr.rel (0) target = $region45
    $region44: #{tpu_custom_call.1} parent=1 // pred_region
      %87 = dma.done [#allocation9], 2048
    $region45: #{tpu_custom_call.1} parent=1 // pred_fallthru
      _
    %v88 = vld [vmem:[%s5] sm:$0x1]
    %v89 = vld [vmem:[%s5 + $0x1] sm:$0x1]
    %v90 = vld [vmem:[%s5 + $0x2] sm:$0x1]
    %v91 = vld [vmem:[%s5 + $0x3] sm:$0x1]
    %v92 = vld [vmem:[#allocation2] sm:$0xff]
    %v93 = vld [vmem:[#allocation5] sm:$0xff]
    %v94 = vmul.f32 %v93, 0.01
    %v95 = vadd.f32 %v92, %v94
    %v96 = vld [vmem:[#allocation7] sm:$0xff]
    %v97 = vld [vmem:[#allocation7 + $0x8] sm:$0xff]
    %v98 = vld [vmem:[#allocation7 + $0x10] sm:$0xff]
    %v99 = vld [vmem:[#allocation7 + $0x18] sm:$0xff]
    %v100 = vld [vmem:[#allocation7 + $0x20] sm:$0xff]
    %v101 = vld [vmem:[#allocation7 + $0x28] sm:$0xff]
    %v102 = vld [vmem:[#allocation7 + $0x30] sm:$0xff]
    %v103 = vld [vmem:[#allocation7 + $0x38] sm:$0xff]
    %v104 = vld [vmem:[#allocation7 + $0x40] sm:$0xff]
    %v105 = vld [vmem:[#allocation7 + $0x48] sm:$0xff]
    %v106 = vld [vmem:[#allocation7 + $0x50] sm:$0xff]
    %v107 = vld [vmem:[#allocation7 + $0x58] sm:$0xff]
    %v108 = vld [vmem:[#allocation7 + $0x60] sm:$0xff]
    %v109 = vld [vmem:[#allocation7 + $0x68] sm:$0xff]
    %v110 = vld [vmem:[#allocation7 + $0x70] sm:$0xff]
    %v111 = vld [vmem:[#allocation7 + $0x78] sm:$0xff]
    %112 = vmatprep.subr.mxu0 0.0
    %113 = vmatpush1.msra.mxu0 %v96
    %114 = vmatprep.subr.mxu0 0.0
    %115 = vmatpush1.msra.mxu0 %v97
    %116 = vmatprep.subr.mxu0 0.0
    %117 = vmatpush1.msra.mxu0 %v98
    %118 = vmatprep.subr.mxu0 0.0
    %119 = vmatpush1.msra.mxu0 %v99
    %120 = vmatprep.subr.mxu0 0.0
    %121 = vmatpush1.msra.mxu0 %v100
    %122 = vmatprep.subr.mxu0 0.0
    %123 = vmatpush1.msra.mxu0 %v101
    %124 = vmatprep.subr.mxu0 0.0
    %125 = vmatpush1.msra.mxu0 %v102
    %126 = vmatprep.subr.mxu0 0.0
    %127 = vmatpush1.msra.mxu0 %v103
    %128 = vmatprep.subr.mxu0 0.0
    %129 = vmatpush1.msra.mxu0 %v104
    %130 = vmatprep.subr.mxu0 0.0
    %131 = vmatpush1.msra.mxu0 %v105
    %132 = vmatprep.subr.mxu0 0.0
    %133 = vmatpush1.msra.mxu0 %v106
    %134 = vmatprep.subr.mxu0 0.0
    %135 = vmatpush1.msra.mxu0 %v107
    %136 = vmatprep.subr.mxu0 0.0
    %137 = vmatpush1.msra.mxu0 %v108
    %138 = vmatprep.subr.mxu0 0.0
    %139 = vmatpush1.msra.mxu0 %v109
    %140 = vmatprep.subr.mxu0 0.0
    %141 = vmatpush1.msra.mxu0 %v110
    %142 = vmatprep.subr.mxu0 0.0
    %143 = vmatpush1.msra.mxu0 %v111
    %144 = vmatprep.subr.mxu0 0.0
    %145 = vmatpush1.msra.mxu0 0.0
    %146 = vmatprep.subr.mxu0 0.0
    %147 = vmatpush1.msra.mxu0 0.0
    %148 = vmatprep.subr.mxu0 0.0
    %149 = vmatpush1.msra.mxu0 0.0
    %150 = vmatprep.subr.mxu0 0.0
    %151 = vmatpush1.msra.mxu0 0.0
    %152 = vmatprep.subr.mxu0 0.0
    %153 = vmatpush1.msra.mxu0 0.0
    %154 = vmatprep.subr.mxu0 0.0
    %155 = vmatpush1.msra.mxu0 0.0
    %156 = vmatprep.subr.mxu0 0.0
    %157 = vmatpush1.msra.mxu0 0.0
    %158 = vmatprep.subr.mxu0 0.0
    %159 = vmatpush1.msra.mxu0 0.0
    %160 = vmatprep.subr.mxu0 0.0
    %161 = vmatpush1.msra.mxu0 0.0
    %162 = vmatprep.subr.mxu0 0.0
    %163 = vmatpush1.msra.mxu0 0.0
    %164 = vmatprep.subr.mxu0 0.0
    %165 = vmatpush1.msra.mxu0 0.0
    %166 = vmatprep.subr.mxu0 0.0
    %167 = vmatpush1.msra.mxu0 0.0
    %168 = vmatprep.subr.mxu0 0.0
    %169 = vmatpush1.msra.mxu0 0.0
    %170 = vmatprep.subr.mxu0 0.0
    %171 = vmatpush1.msra.mxu0 0.0
    %172 = vmatprep.subr.mxu0 0.0
    %173 = vmatpush1.msra.mxu0 0.0
    %174 = vmatprep.subr.mxu0 0.0
    %175 = vmatpush1.msra.mxu0 0.0
    %176 = vmatprep.mubr.f32.mxu0 0.0
    %177 = vmatmul.mubr.f32.gmra.mrb[0].mxu0 %v95
    %v178 = vpop.f32.mrb[0].mxu0
    %v179 = vadd.f32 0.0, %v178
    %v180 = vpop.f32.mrb[0].mxu0
    %181 = vdwg.mxu0
    %v182 = vrot.slane %v179, 4
    %v183 = vadd.f32 %v179, %v182
    %v184 = vrot.slane %v183, 2
    %v185 = vadd.f32 %v183, %v184
    %v186 = vrot.slane %v185, 1
    %v187 = vadd.f32 %v185, %v186
    %v188 = vrcp.pop 8.0
    %v189 = vmul.f32 %v187, %v188
    %v190 = vsub.f32 %v179, %v189
    %v191 = vmul.f32 %v190, %v190
    %v192 = vrot.slane %v191, 4
    %v193 = vadd.f32 %v191, %v192
    %v194 = vrot.slane %v193, 2
    %v195 = vadd.f32 %v193, %v194
    %v196 = vrot.slane %v195, 1
    %v197 = vadd.f32 %v195, %v196
    %v198 = vmul.f32 %v197, %v188
    %v199 = vadd.f32 %v198, 1e-05
    %v200 = vrsqrt.pop %v199
    %v201 = vmul.f32 %v88, %v200
    %v202 = vmul.f32 %v189, %v201
    %v203 = vsub.f32 %v89, %v202
    %v204 = vlaneseq
    %v205 = vshrl.u32 %v204, 7
    %v206 = vsub.s32 0, %v205
    %v207 = vrot.slane %v201, %v206
    %v208 = vmul.f32 %v179, %v207
    %v209 = vlaneseq
    %v210 = vshrl.u32 %v209, 7
    %v211 = vsub.s32 0, %v210
    %v212 = vrot.slane %v203, %v211
    %v213 = vadd.f32 %v208, %v212
    %v214 = vmul.f32 %v213, 0.2
    %v215 = vmax.f32 %v213, %v214
    %v216 = vld [vmem:[#allocation8] sm:$0xff]
    %v217 = vld [vmem:[#allocation8 + $0x8] sm:$0xff]
    %v218 = vld [vmem:[#allocation8 + $0x10] sm:$0xff]
    %v219 = vld [vmem:[#allocation8 + $0x18] sm:$0xff]
    %v220 = vld [vmem:[#allocation8 + $0x20] sm:$0xff]
    %v221 = vld [vmem:[#allocation8 + $0x28] sm:$0xff]
    %v222 = vld [vmem:[#allocation8 + $0x30] sm:$0xff]
    %v223 = vld [vmem:[#allocation8 + $0x38] sm:$0xff]
    %v224 = vld [vmem:[#allocation8 + $0x40] sm:$0xff]
    %v225 = vld [vmem:[#allocation8 + $0x48] sm:$0xff]
    %v226 = vld [vmem:[#allocation8 + $0x50] sm:$0xff]
    %v227 = vld [vmem:[#allocation8 + $0x58] sm:$0xff]
    %v228 = vld [vmem:[#allocation8 + $0x60] sm:$0xff]
    %v229 = vld [vmem:[#allocation8 + $0x68] sm:$0xff]
    %v230 = vld [vmem:[#allocation8 + $0x70] sm:$0xff]
    %v231 = vld [vmem:[#allocation8 + $0x78] sm:$0xff]
    %232 = vmatprep.subr.mxu0 0.0
    %233 = vmatpush1.msra.mxu0 %v216
    %234 = vmatprep.subr.mxu0 0.0
    %235 = vmatpush1.msra.mxu0 %v217
    %236 = vmatprep.subr.mxu0 0.0
    %237 = vmatpush1.msra.mxu0 %v218
    %238 = vmatprep.subr.mxu0 0.0
    %239 = vmatpush1.msra.mxu0 %v219
    %240 = vmatprep.subr.mxu0 0.0
    %241 = vmatpush1.msra.mxu0 %v220
    %242 = vmatprep.subr.mxu0 0.0
    %243 = vmatpush1.msra.mxu0 %v221
    %244 = vmatprep.subr.mxu0 0.0
    %245 = vmatpush1.msra.mxu0 %v222
    %246 = vmatprep.subr.mxu0 0.0
    %247 = vmatpush1.msra.mxu0 %v223
    %248 = vmatprep.subr.mxu0 0.0
    %249 = vmatpush1.msra.mxu0 %v224
    %250 = vmatprep.subr.mxu0 0.0
    %251 = vmatpush1.msra.mxu0 %v225
    %252 = vmatprep.subr.mxu0 0.0
    %253 = vmatpush1.msra.mxu0 %v226
    %254 = vmatprep.subr.mxu0 0.0
    %255 = vmatpush1.msra.mxu0 %v227
    %256 = vmatprep.subr.mxu0 0.0
    %257 = vmatpush1.msra.mxu0 %v228
    %258 = vmatprep.subr.mxu0 0.0
    %259 = vmatpush1.msra.mxu0 %v229
    %260 = vmatprep.subr.mxu0 0.0
    %261 = vmatpush1.msra.mxu0 %v230
    %262 = vmatprep.subr.mxu0 0.0
    %263 = vmatpush1.msra.mxu0 %v231
    %264 = vmatprep.subr.mxu0 0.0
    %265 = vmatpush1.msra.mxu0 0.0
    %266 = vmatprep.subr.mxu0 0.0
    %267 = vmatpush1.msra.mxu0 0.0
    %268 = vmatprep.subr.mxu0 0.0
    %269 = vmatpush1.msra.mxu0 0.0
    %270 = vmatprep.subr.mxu0 0.0
    %271 = vmatpush1.msra.mxu0 0.0
    %272 = vmatprep.subr.mxu0 0.0
    %273 = vmatpush1.msra.mxu0 0.0
    %274 = vmatprep.subr.mxu0 0.0
    %275 = vmatpush1.msra.mxu0 0.0
    %276 = vmatprep.subr.mxu0 0.0
    %277 = vmatpush1.msra.mxu0 0.0
    %278 = vmatprep.subr.mxu0 0.0
    %279 = vmatpush1.msra.mxu0 0.0
    %280 = vmatprep.subr.mxu0 0.0
    %281 = vmatpush1.msra.mxu0 0.0
    %282 = vmatprep.subr.mxu0 0.0
    %283 = vmatpush1.msra.mxu0 0.0
    %284 = vmatprep.subr.mxu0 0.0
    %285 = vmatpush1.msra.mxu0 0.0
    %286 = vmatprep.subr.mxu0 0.0
    %287 = vmatpush1.msra.mxu0 0.0
    %288 = vmatprep.subr.mxu0 0.0
    %289 = vmatpush1.msra.mxu0 0.0
    %290 = vmatprep.subr.mxu0 0.0
    %291 = vmatpush1.msra.mxu0 0.0
    %292 = vmatprep.subr.mxu0 0.0
    %293 = vmatpush1.msra.mxu0 0.0
    %294 = vmatprep.subr.mxu0 0.0
    %295 = vmatpush1.msra.mxu0 0.0
    %296 = vmatprep.mubr.f32.mxu0 0.0
    %297 = vmatmul.mubr.f32.gmra.mrb[0].mxu0 %v215
    %v298 = vpop.f32.mrb[0].mxu0
    %v299 = vadd.f32 0.0, %v298
    %v300 = vpop.f32.mrb[0].mxu0
    %301 = vdwg.mxu0
    %v302 = vrot.slane %v299, 4
    %v303 = vadd.f32 %v299, %v302
    %v304 = vrot.slane %v303, 2
    %v305 = vadd.f32 %v303, %v304
    %v306 = vrot.slane %v305, 1
    %v307 = vadd.f32 %v305, %v306
    %v308 = vmul.f32 %v307, %v188
    %v309 = vsub.f32 %v299, %v308
    %v310 = vmul.f32 %v309, %v309
    %v311 = vrot.slane %v310, 4
    %v312 = vadd.f32 %v310, %v311
    %v313 = vrot.slane %v312, 2
    %v314 = vadd.f32 %v312, %v313
    %v315 = vrot.slane %v314, 1
    %v316 = vadd.f32 %v314, %v315
    %v317 = vmul.f32 %v316, %v188
    %v318 = vadd.f32 %v317, 1e-05
    %v319 = vrsqrt.pop %v318
    %v320 = vmul.f32 %v90, %v319
    %v321 = vmul.f32 %v308, %v320
    %v322 = vsub.f32 %v91, %v321
    %v323 = vlaneseq
    %v324 = vshrl.u32 %v323, 7
    %v325 = vsub.s32 0, %v324
    %v326 = vrot.slane %v320, %v325
    %v327 = vmul.f32 %v299, %v326
    %v328 = vlaneseq
    %v329 = vshrl.u32 %v328, 7
    %v330 = vsub.s32 0, %v329
    %v331 = vrot.slane %v322, %v330
    %v332 = vadd.f32 %v327, %v331
    %v333 = vmul.f32 %v332, 0.2
    %v334 = vmax.f32 %v332, %v333
    %v335 = vld [vmem:[#allocation10] sm:$0xff]
    %v336 = vld [vmem:[#allocation10 + $0x8] sm:$0xff]
    %v337 = vld [vmem:[#allocation10 + $0x10] sm:$0xff]
    %v338 = vld [vmem:[#allocation10 + $0x18] sm:$0xff]
    %v339 = vld [vmem:[#allocation10 + $0x20] sm:$0xff]
    %v340 = vld [vmem:[#allocation10 + $0x28] sm:$0xff]
    %v341 = vld [vmem:[#allocation10 + $0x30] sm:$0xff]
    %v342 = vld [vmem:[#allocation10 + $0x38] sm:$0xff]
    %v343 = vld [vmem:[#allocation10 + $0x40] sm:$0xff]
    %v344 = vld [vmem:[#allocation10 + $0x48] sm:$0xff]
    %v345 = vld [vmem:[#allocation10 + $0x50] sm:$0xff]
    %v346 = vld [vmem:[#allocation10 + $0x58] sm:$0xff]
    %v347 = vld [vmem:[#allocation10 + $0x60] sm:$0xff]
    %v348 = vld [vmem:[#allocation10 + $0x68] sm:$0xff]
    %v349 = vld [vmem:[#allocation10 + $0x70] sm:$0xff]
    %v350 = vld [vmem:[#allocation10 + $0x78] sm:$0xff]
    %v351 = vld [vmem:[%s5 + $0x4] sm:$0x1]
    %v352 = vlaneseq
    %v353 = vshrl.u32 %v352, 7
    %v354 = vsub.s32 0, %v353
    %v355 = vrot.slane %v351, %v354
    %356 = vmatprep.subr.mxu0 0.0
    %357 = vmatpush1.msra.mxu0 %v335
    %358 = vmatprep.subr.mxu0 0.0
    %359 = vmatpush1.msra.mxu0 %v336
    %360 = vmatprep.subr.mxu0 0.0
    %361 = vmatpush1.msra.mxu0 %v337
    %362 = vmatprep.subr.mxu0 0.0
    %363 = vmatpush1.msra.mxu0 %v338
    %364 = vmatprep.subr.mxu0 0.0
    %365 = vmatpush1.msra.mxu0 %v339
    %366 = vmatprep.subr.mxu0 0.0
    %367 = vmatpush1.msra.mxu0 %v340
    %368 = vmatprep.subr.mxu0 0.0
    %369 = vmatpush1.msra.mxu0 %v341
    %370 = vmatprep.subr.mxu0 0.0
    %371 = vmatpush1.msra.mxu0 %v342
    %372 = vmatprep.subr.mxu0 0.0
    %373 = vmatpush1.msra.mxu0 %v343
    %374 = vmatprep.subr.mxu0 0.0
    %375 = vmatpush1.msra.mxu0 %v344
    %376 = vmatprep.subr.mxu0 0.0
    %377 = vmatpush1.msra.mxu0 %v345
    %378 = vmatprep.subr.mxu0 0.0
    %379 = vmatpush1.msra.mxu0 %v346
    %380 = vmatprep.subr.mxu0 0.0
    %381 = vmatpush1.msra.mxu0 %v347
    %382 = vmatprep.subr.mxu0 0.0
    %383 = vmatpush1.msra.mxu0 %v348
    %384 = vmatprep.subr.mxu0 0.0
    %385 = vmatpush1.msra.mxu0 %v349
    %386 = vmatprep.subr.mxu0 0.0
    %387 = vmatpush1.msra.mxu0 %v350
    %388 = vmatprep.subr.mxu0 0.0
    %389 = vmatpush1.msra.mxu0 0.0
    %390 = vmatprep.subr.mxu0 0.0
    %391 = vmatpush1.msra.mxu0 0.0
    %392 = vmatprep.subr.mxu0 0.0
    %393 = vmatpush1.msra.mxu0 0.0
    %394 = vmatprep.subr.mxu0 0.0
    %395 = vmatpush1.msra.mxu0 0.0
    %396 = vmatprep.subr.mxu0 0.0
    %397 = vmatpush1.msra.mxu0 0.0
    %398 = vmatprep.subr.mxu0 0.0
    %399 = vmatpush1.msra.mxu0 0.0
    %400 = vmatprep.subr.mxu0 0.0
    %401 = vmatpush1.msra.mxu0 0.0
    %402 = vmatprep.subr.mxu0 0.0
    %403 = vmatpush1.msra.mxu0 0.0
    %404 = vmatprep.subr.mxu0 0.0
    %405 = vmatpush1.msra.mxu0 0.0
    %406 = vmatprep.subr.mxu0 0.0
    %407 = vmatpush1.msra.mxu0 0.0
    %408 = vmatprep.subr.mxu0 0.0
    %409 = vmatpush1.msra.mxu0 0.0
    %410 = vmatprep.subr.mxu0 0.0
    %411 = vmatpush1.msra.mxu0 0.0
    %412 = vmatprep.subr.mxu0 0.0
    %413 = vmatpush1.msra.mxu0 0.0
    %414 = vmatprep.subr.mxu0 0.0
    %415 = vmatpush1.msra.mxu0 0.0
    %416 = vmatprep.subr.mxu0 0.0
    %417 = vmatpush1.msra.mxu0 0.0
    %418 = vmatprep.subr.mxu0 0.0
    %419 = vmatpush1.msra.mxu0 0.0
    %420 = vmatprep.mubr.f32.mxu0 0.0
    %421 = vmatmul.mubr.f32.gmra.mrb[0].mxu0 %v334
    %v422 = vpop.f32.mrb[0].mxu0
    %v423 = vadd.f32 %v355, %v422
    %v424 = vpop.f32.mrb[0].mxu0
    %425 = vdwg.mxu0
    %426 = vst [vmem:[#allocation11] sm:$0xff] %v423
    // Predicated region
    $region46: #{tpu_custom_call.1} parent=1 // pred_check
      _
    $region47: #{tpu_custom_call.1} parent=1 // pred_check_branch
      %428 = sbr.rel (0) target = $region49
    $region48: #{tpu_custom_call.1} parent=1 // pred_region
      %s430 = ssub.s32 128, 128
      %431 = vsyncadd [#allocation4], %s430
      %s433 = sshll.u32 [#allocation11], 4
      %s434 = int_to_ptr.vmem [resolvable:$true] %s433
      %436 = dma.vmem_to_hbm [thread:$0]  %s434, 128, %s6, [#allocation4]
    $region49: #{tpu_custom_call.1} parent=1 // pred_fallthru
      _
    // Predicated region
    $region50: #{tpu_custom_call.1} parent=1 // pred_check
      _
    $region51: #{tpu_custom_call.1} parent=1 // pred_check_branch
      %438 = sbr.rel (0) target = $region53
    $region52: #{tpu_custom_call.1} parent=1 // pred_region
      %439 = dma.done [#allocation4], 128
    $region53: #{tpu_custom_call.1} parent=1 // pred_fallthru
      _
    %440 = vsyncpa [#allocation3], 1
    %441 = vsyncpa [#allocation6], 1
    %442 = vsyncpa [#allocation9], 1
    %443 = vsyncpa [#allocation4], 1

</llo_original>
